<compile_context>
chip_gen: v7x
topology: tpu7x:2x2x1
jax: 0.10.0
libtpu: 0.0.40
codegen_flags: <defaults>
</compile_context>

<pallas_src>
import jax
import jax.numpy as jnp
from jax.experimental import pallas as pl
from jax.experimental.pallas import tpu as pltpu

EPS = 1e-5


def multi_transform_kernel(x_ref, params_ref, gain_ref, bias_ref,
                           o_norm_ref, o_affine_ref, o_std_ref):
    x = x_ref[...]                                   # (TILE_R, HW) f32 in VMEM
    p = params_ref[...]                              # (TILE_R, 2): [mean, 1/std]
    mean = p[:, 0:1]
    inv_std = p[:, 1:2]

    # ---- transform 0: per-channel normalize (reciprocal precomputed outside)
    xc = x - mean                                    # reused by transform 2
    o_norm_ref[...] = (xc * inv_std).astype(o_norm_ref.dtype)

    # ---- transform 1: scalar affine (scalars live in SMEM)
    o_affine_ref[...] = (gain_ref[0] * x + bias_ref[0]).astype(o_affine_ref.dtype)

    # ---- transform 2: per-row (per (n, c)) standardization.
    # Single pass on the mean-shifted values: var(x) == var(x - mean[c]) and
    # x - mu == xc - mean(xc), so shifting by the already-loaded channel mean
    # removes the E[x^2]-E[x]^2 cancellation problem at no extra elementwise
    # cost (xc is shared with transform 0).
    inv_hw = 1.0 / x.shape[-1]
    s1 = jnp.sum(xc, axis=-1, keepdims=True)
    s2 = jnp.sum(xc * xc, axis=-1, keepdims=True)
    m = s1 * inv_hw
    var = jnp.maximum(s2 * inv_hw - m * m, 0.0)      # clamp: no NaN on flat rows
    o_std_ref[...] = ((xc - m) * jax.lax.rsqrt(var + EPS)).astype(o_std_ref.dtype)


def _choose_tile_r(R, HW):
    """Row-tile size.

    ~4 MiB of f32 input per tile-buffer; with default double-buffering the
    live set (input + 3 outputs + tiny params) stays well under 40 MiB, which
    fits every generation (incl. v7x's 64 MiB physical VMEM) while amortizing
    the fixed ~0.35 us per-grid-step overhead.
    """
    target_elems = (4 << 20) // 4                    # 4 MiB of f32
    rows = max(8, ((target_elems // max(HW, 1)) // 8) * 8)
    if R <= rows:
        # Everything fits in one tile: use the full row extent (exempt from
        # the /8 rule); grid=(1,) is unavoidable in this regime anyway.
        return R
    # Multi-tile: multiple of 8; the last tile may be partial (padded rows
    # compute garbage but their stores are masked by the pipeline).
    return rows


def multiple_transform(x, chan_mean, chan_std, gain, bias,
                       out_dtype=jnp.bfloat16):
    """Returns a list of 3 transformed arrays, each shaped like x (NCHW)."""
    N, C, H, W = x.shape
    R, HW = N * C, H * W
    x2 = x.reshape(R, HW).astype(jnp.float32)

    # Per-row (N*C) params fused into one (R, 2) array: col 0 = mean,
    # col 1 = 1/std (divide folded into a reciprocal once, outside the kernel).
    mean_rows = jnp.tile(chan_mean.astype(jnp.float32), (N,))
    inv_std_rows = 1.0 / jnp.tile(chan_std.astype(jnp.float32), (N,))
    params_rows = jnp.stack([mean_rows, inv_std_rows], axis=-1)      # (R, 2)

    tile_r = _choose_tile_r(R, HW)
    grid = (pl.cdiv(R, tile_r),)

    out_bytes = jnp.dtype(out_dtype).itemsize
    cost = pl.CostEstimate(
        flops=12 * R * HW,                          # ~12 VPU ops/elem across 3 outputs
        transcendentals=R,                          # one rsqrt per row
        bytes_accessed=R * HW * (4 + 3 * out_bytes) + R * 2 * 4,
    )

    outs = pl.pallas_call(
        multi_transform_kernel,
        out_shape=tuple(jax.ShapeDtypeStruct((R, HW), out_dtype)
                        for _ in range(3)),
        grid=grid,
        in_specs=[
            pl.BlockSpec((tile_r, HW), lambda i: (i, 0)),            # x
            pl.BlockSpec((tile_r, 2), lambda i: (i, 0)),             # fused params
            pl.BlockSpec(memory_space=pltpu.MemorySpace.SMEM),       # gain (scalar)
            pl.BlockSpec(memory_space=pltpu.MemorySpace.SMEM),       # bias (scalar)
        ],
        out_specs=tuple(pl.BlockSpec((tile_r, HW), lambda i: (i, 0))
                        for _ in range(3)),
        compiler_params=pltpu.CompilerParams(
            # Row axis is independent work -> shards across v7x's 2 TCs.
            dimension_semantics=("parallel",),
            vmem_limit_bytes=40 << 20,
        ),
        cost_estimate=cost,
    )(x2, params_rows, gain.astype(jnp.float32), bias.astype(jnp.float32))

    return [o.reshape(N, C, H, W) for o in outs]


def _reference(x, chan_mean, chan_std, gain, bias):
    # Pure-JAX reference of the three transforms (NCHW), f32.
    m = chan_mean.reshape(1, -1, 1, 1)
    s = chan_std.reshape(1, -1, 1, 1)
    t0 = (x - m) / s
    t1 = gain[0] * x + bias[0]
    mu = jnp.mean(x, axis=(2, 3), keepdims=True)
    var = jnp.mean((x - mu) ** 2, axis=(2, 3), keepdims=True)
    t2 = (x - mu) * jax.lax.rsqrt(var + EPS)
    return [t0, t1, t2]


if __name__ == "__main__":
    key = jax.random.PRNGKey(0)
    x = jax.random.normal(key, (2, 4, 16, 16), dtype=jnp.float32)

    # Deterministic "parameters" of the synthetic transforms.
    chan_mean = jnp.array([0.485, 0.456, 0.406, 0.5], dtype=jnp.float32)
    chan_std = jnp.array([0.229, 0.224, 0.225, 0.25], dtype=jnp.float32)
    gain = jnp.array([2.0], dtype=jnp.float32)
    bias = jnp.array([-0.5], dtype=jnp.float32)

    refs = _reference(x, chan_mean, chan_std, gain, bias)

    # ---- exact-semantics path (f32 outputs): tight correctness check.
    outs_f32 = multiple_transform(x, chan_mean, chan_std, gain, bias,
                                  out_dtype=jnp.float32)
    for o in outs_f32:
        jax.block_until_ready(o)
    for o, r in zip(outs_f32, refs):
        assert o.shape == r.shape and o.dtype == jnp.float32
        assert jnp.max(jnp.abs(o - r)) < 1e-4, "f32 mismatch vs reference"

    # ---- perf-default path (bf16 outputs): halves writeback bytes; check at
    # bf16 precision.
    outs_bf16 = multiple_transform(x, chan_mean, chan_std, gain, bias)
    for o in outs_bf16:
        jax.block_until_ready(o)
    for o, r in zip(outs_bf16, refs):
        assert o.shape == r.shape and o.dtype == jnp.bfloat16
        rel = jnp.max(jnp.abs(o.astype(jnp.float32) - r) / (jnp.abs(r) + 1.0))
        assert rel < 2e-2, "bf16 mismatch vs reference"

    print("KERNEL_OK")
</pallas_src>

<mosaic_0001>
module attributes {stable_mosaic.version = 11 : i64} {
  func.func @multi_transform_kernel(%arg0: i32, %arg1: memref<8x256xf32, #tpu.memory_space<vmem>>, %arg2: memref<8x2xf32, #tpu.memory_space<vmem>>, %arg3: memref<1xf32, #tpu.memory_space<smem>>, %arg4: memref<1xf32, #tpu.memory_space<smem>>, %arg5: memref<8x256xf32, #tpu.memory_space<vmem>>, %arg6: memref<8x256xf32, #tpu.memory_space<vmem>>, %arg7: memref<8x256xf32, #tpu.memory_space<vmem>>) attributes {dimension_semantics = [#tpu.dimension_semantics<parallel>], iteration_bounds = array<i64: 1>, scalar_prefetch = 0 : i64, scratch_operands = 0 : i64, tpu.core_type = #tpu.core_type<tc>, window_params = [{transform_indices = @transform_0, window_bounds = array<i64: 8, 256>}, {transform_indices = @transform_1, window_bounds = array<i64: 8, 2>}, {transform_indices = @transform_2, window_bounds = array<i64: 1>}, {transform_indices = @transform_3, window_bounds = array<i64: 1>}, {transform_indices = @transform_4, window_bounds = array<i64: 8, 256>}, {transform_indices = @transform_5, window_bounds = array<i64: 8, 256>}, {transform_indices = @transform_6, window_bounds = array<i64: 8, 256>}]} {
    %c0 = arith.constant 0 : index
    %c0_0 = arith.constant 0 : index
    %0 = vector.load %arg1[%c0, %c0_0] : memref<8x256xf32, #tpu.memory_space<vmem>>, vector<8x256xf32>
    %c0_1 = arith.constant 0 : index
    %c0_2 = arith.constant 0 : index
    %1 = vector.load %arg2[%c0_1, %c0_2] : memref<8x2xf32, #tpu.memory_space<vmem>>, vector<8x2xf32>
    %2 = vector.extract_strided_slice %1 {offsets = [0, 0], sizes = [8, 1], strides = [1, 1]} : vector<8x2xf32> to vector<8x1xf32>
    %3 = vector.extract_strided_slice %1 {offsets = [0, 1], sizes = [8, 1], strides = [1, 1]} : vector<8x2xf32> to vector<8x1xf32>
    %4 = vector.broadcast %2 : vector<8x1xf32> to vector<8x256xf32>
    %5 = arith.subf %0, %4 : vector<8x256xf32>
    %6 = vector.broadcast %3 : vector<8x1xf32> to vector<8x256xf32>
    %7 = arith.mulf %5, %6 : vector<8x256xf32>
    %c0_3 = arith.constant 0 : index
    %c0_4 = arith.constant 0 : index
    %8 = vector.load %arg5[%c0_3, %c0_4] : memref<8x256xf32, #tpu.memory_space<vmem>>, vector<8x256xf32>
    tpu.vector_store %arg5[%c0_3, %c0_4], %7 {strides = array<i32>} : memref<8x256xf32, #tpu.memory_space<vmem>>, vector<8x256xf32>,
    %c0_5 = arith.constant 0 : index
    %9 = memref.load %arg3[%c0_5] : memref<1xf32, #tpu.memory_space<smem>>
    %10 = vector.broadcast %9 : f32 to vector<8x256xf32>
    %11 = arith.mulf %10, %0 : vector<8x256xf32>
    %c0_6 = arith.constant 0 : index
    %12 = memref.load %arg4[%c0_6] : memref<1xf32, #tpu.memory_space<smem>>
    %13 = vector.broadcast %12 : f32 to vector<8x256xf32>
    %14 = arith.addf %11, %13 : vector<8x256xf32>
    %c0_7 = arith.constant 0 : index
    %c0_8 = arith.constant 0 : index
    %15 = vector.load %arg6[%c0_7, %c0_8] : memref<8x256xf32, #tpu.memory_space<vmem>>, vector<8x256xf32>
    tpu.vector_store %arg6[%c0_7, %c0_8], %14 {strides = array<i32>} : memref<8x256xf32, #tpu.memory_space<vmem>>, vector<8x256xf32>,
    %cst = arith.constant dense<0.000000e+00> : vector<8xf32>
    %16 = vector.multi_reduction <add>, %5, %cst [1] : vector<8x256xf32> to vector<8xf32>
    %17 = vector.shape_cast %16 : vector<8xf32> to vector<8x1xf32>
    %18 = arith.mulf %5, %5 : vector<8x256xf32>
    %cst_9 = arith.constant dense<0.000000e+00> : vector<8xf32>
    %19 = vector.multi_reduction <add>, %18, %cst_9 [1] : vector<8x256xf32> to vector<8xf32>
    %20 = vector.shape_cast %19 : vector<8xf32> to vector<8x1xf32>
    %cst_10 = arith.constant 3.906250e-03 : f32
    %21 = vector.broadcast %cst_10 : f32 to vector<8x1xf32>
    %22 = arith.mulf %17, %21 : vector<8x1xf32>
    %cst_11 = arith.constant 3.906250e-03 : f32
    %23 = vector.broadcast %cst_11 : f32 to vector<8x1xf32>
    %24 = arith.mulf %20, %23 : vector<8x1xf32>
    %25 = arith.mulf %22, %22 : vector<8x1xf32>
    %26 = arith.subf %24, %25 : vector<8x1xf32>
    %cst_12 = arith.constant 0.000000e+00 : f32
    %27 = vector.broadcast %cst_12 : f32 to vector<8x1xf32>
    %28 = arith.maximumf %26, %27 : vector<8x1xf32>
    %29 = vector.broadcast %22 : vector<8x1xf32> to vector<8x256xf32>
    %30 = arith.subf %5, %29 : vector<8x256xf32>
    %cst_13 = arith.constant 9.99999974E-6 : f32
    %31 = vector.broadcast %cst_13 : f32 to vector<8x1xf32>
    %32 = arith.addf %28, %31 : vector<8x1xf32>
    %33 = math.rsqrt %32 : vector<8x1xf32>
    %34 = vector.broadcast %33 : vector<8x1xf32> to vector<8x256xf32>
    %35 = arith.mulf %30, %34 : vector<8x256xf32>
    %c0_14 = arith.constant 0 : index
    %c0_15 = arith.constant 0 : index
    %36 = vector.load %arg7[%c0_14, %c0_15] : memref<8x256xf32, #tpu.memory_space<vmem>>, vector<8x256xf32>
    tpu.vector_store %arg7[%c0_14, %c0_15], %35 {strides = array<i32>} : memref<8x256xf32, #tpu.memory_space<vmem>>, vector<8x256xf32>,
    return
  }
  func.func @transform_0(%arg0: i32) -> (i32, i32) {
    %c0_i32 = arith.constant 0 : i32
    %c0_i32_0 = arith.constant 0 : i32
    return %arg0, %c0_i32 : i32, i32
  }
  func.func @transform_1(%arg0: i32) -> (i32, i32) {
    %c0_i32 = arith.constant 0 : i32
    %c0_i32_0 = arith.constant 0 : i32
    return %arg0, %c0_i32 : i32, i32
  }
  func.func @transform_2(%arg0: i32) -> i32 {
    %c0_i32 = arith.constant 0 : i32
    %c0_i32_0 = arith.constant 0 : i32
    return %c0_i32 : i32
  }
  func.func @transform_3(%arg0: i32) -> i32 {
    %c0_i32 = arith.constant 0 : i32
    %c0_i32_0 = arith.constant 0 : i32
    return %c0_i32 : i32
  }
  func.func @transform_4(%arg0: i32) -> (i32, i32) {
    %c0_i32 = arith.constant 0 : i32
    %c0_i32_0 = arith.constant 0 : i32
    return %arg0, %c0_i32 : i32, i32
  }
  func.func @transform_5(%arg0: i32) -> (i32, i32) {
    %c0_i32 = arith.constant 0 : i32
    %c0_i32_0 = arith.constant 0 : i32
    return %arg0, %c0_i32 : i32, i32
  }
  func.func @transform_6(%arg0: i32) -> (i32, i32) {
    %c0_i32 = arith.constant 0 : i32
    %c0_i32_0 = arith.constant 0 : i32
    return %arg0, %c0_i32 : i32, i32
  }
}

</mosaic_0001>

<llo_original>
// kernel: tpu_custom_call.1
$region0: #{tpu_custom_call.1}
  #allocation0 [shape = 'u32[]', space=smem, size = 0x4, offset = 0x4, fixed_abs, tag = 'smem constant byte address 0x4 - core index']
  #allocation1 [shape = 'u32[144,128]{1,0:T(1,128)}', space=vmem, size = 0x12000, scoped, tag = 'internal scratch']
  #allocation2 [shape = 'f32[1]{0:T(128)S(6)}', space=smem, size = 0x200, scoped, tag = 'scoped memory for tpu_custom_call.1']
  #allocation3 [shape = 'f32[1]{0:T(128)S(6)}', space=smem, size = 0x200, scoped, tag = 'scoped memory for tpu_custom_call.1']
  %s0 = inlined_call_operand.vmem [shape: f32[8,256], index: 0, kind: input, shape index: {}]
  %s1 = inlined_call_operand.vmem [shape: f32[8,2], index: 1, kind: input, shape index: {}]
  %s2 = inlined_call_operand.<no memory space> [shape: f32[1], index: 2, kind: input, shape index: {}]
  %s3 = inlined_call_operand.<no memory space> [shape: f32[1], index: 3, kind: input, shape index: {}]
  %s4 = inlined_call_operand.hbm [shape: f32[8,256], index: 4, kind: output, shape index: {0}]
  %s5 = inlined_call_operand.hbm [shape: f32[8,256], index: 5, kind: output, shape index: {1}]
  %s6 = inlined_call_operand.hbm [shape: f32[8,256], index: 6, kind: output, shape index: {2}]
  %7 = xla_tuple %s4, %s5, %s6
  %s8 = sld [smem:[#allocation0]]
  $region42: #{tpu_custom_call.1} parent=0
    _
  %s10 = ssub.s32 1, %s8
  %s11 = scalar_select 0, %s10, %s8
  %12 = sst [smem:[#allocation2]] %s2
  %13 = sst [smem:[#allocation3]] %s3
  $region1: #{tpu_custom_call.1} parent=0
    #allocation4 [shape = 'u8[8192]{0}', space=vmem, size = 0x2000, scoped, tag = 'output window, operand 0, single buffered']
    #allocation5 [shape = 's32[1]{0}', space=sflag, size = 0x4, scoped, tag = 'scoped memory for tpu_custom_call.1']
    #allocation6 [shape = 'u8[8192]{0}', space=vmem, size = 0x2000, scoped, tag = 'output window, operand 1, single buffered']
    #allocation7 [shape = 's32[1]{0}', space=sflag, size = 0x4, scoped, tag = 'scoped memory for tpu_custom_call.1']
    #allocation8 [shape = 'u8[8192]{0}', space=vmem, size = 0x2000, scoped, tag = 'output window, operand 2, single buffered']
    %14 = vsyncpa [#allocation5], 0
    %15 = vsyncpa [#allocation7], 0
    // Predicated region
    $region2: #{tpu_custom_call.1} parent=1 // pred_check
      _
    $region3: #{tpu_custom_call.1} parent=1 // pred_check_branch
      %17 = sbr.rel (0) target = $region5
    $region4: #{tpu_custom_call.1} parent=1 // pred_region
      _
    $region5: #{tpu_custom_call.1} parent=1 // pred_fallthru
      _
    // Predicated region
    $region6: #{tpu_custom_call.1} parent=1 // pred_check
      _
    $region7: #{tpu_custom_call.1} parent=1 // pred_check_branch
      %19 = sbr.rel (0) target = $region9
    $region8: #{tpu_custom_call.1} parent=1 // pred_region
      _
    $region9: #{tpu_custom_call.1} parent=1 // pred_fallthru
      _
    // Predicated region
    $region10: #{tpu_custom_call.1} parent=1 // pred_check
      _
    $region11: #{tpu_custom_call.1} parent=1 // pred_check_branch
      %21 = sbr.rel (0) target = $region13
    $region12: #{tpu_custom_call.1} parent=1 // pred_region
      _
    $region13: #{tpu_custom_call.1} parent=1 // pred_fallthru
      _
    // Predicated region
    $region14: #{tpu_custom_call.1} parent=1 // pred_check
      _
    $region15: #{tpu_custom_call.1} parent=1 // pred_check_branch
      %23 = sbr.rel (0) target = $region17
    $region16: #{tpu_custom_call.1} parent=1 // pred_region
      _
    $region17: #{tpu_custom_call.1} parent=1 // pred_fallthru
      _
    %v24 = vld [vmem:[%s0] sm:$0xff]
    %v25 = vld [vmem:[%s0 + $0x8] sm:$0xff]
    %v26 = vld [vmem:[%s1] sm:$0xff]
    %28 = vset.pattern.permute.xlu0 0
    %29 = vperm.xlu0 %28, %v26
    %v30 = vpop.permute.xlu0 %29
    %v32 = vsub.f32 %v24, %v30
    %v33 = vsub.f32 %v25, %v30
    %34 = vset.pattern.permute.xlu0 1
    %35 = vperm.xlu0 %34, %v26
    %v36 = vpop.permute.xlu0 %35
    %v38 = vmul.f32 %v32, %v36
    %v39 = vmul.f32 %v33, %v36
    %40 = vst [vmem:[#allocation4] sm:$0xff] %v38
    %41 = vst [vmem:[#allocation4 + $0x8] sm:$0xff] %v39
    %s42 = sld [smem:[#allocation2]]
    %v43 = vstv %s42
    %v44 = vmul.f32 %v43, %v24
    %v45 = vmul.f32 %v43, %v25
    %s46 = sld [smem:[#allocation3]]
    %v47 = vstv %s46
    %v48 = vadd.f32 %v44, %v47
    %v49 = vadd.f32 %v45, %v47
    %50 = vst [vmem:[#allocation6] sm:$0xff] %v48
    %51 = vst [vmem:[#allocation6 + $0x8] sm:$0xff] %v49
    %v52 = vadd.f32 %v32, %v33
    %53 = vadd.xlane.f32.xlu0 %v52
    %v54 = vpop.xlane.xlu0 %53
    %v55 = vmul.f32 %v32, %v32
    %v56 = vmul.f32 %v33, %v33
    %v57 = vadd.f32 %v55, %v56
    %58 = vadd.xlane.f32.xlu0 %v57
    %v59 = vpop.xlane.xlu0 %58
    %v60 = vmul.f32 %v54, 0.00390625
    %v61 = vmul.f32 %v59, 0.00390625
    %v62 = vmul.f32 %v60, %v60
    %v63 = vsub.f32 %v61, %v62
    %v64 = vmax.f32 %v63, 0.0
    %v65 = vsub.f32 %v32, %v60
    %v66 = vsub.f32 %v33, %v60
    %v67 = vadd.f32 %v64, 1e-05
    %v68 = vrsqrt.pop %v67
    %v69 = vmul.f32 %v65, %v68
    %v70 = vmul.f32 %v66, %v68
    %71 = vst [vmem:[#allocation8] sm:$0xff] %v69
    %72 = vst [vmem:[#allocation8 + $0x8] sm:$0xff] %v70
    // Predicated region
    $region18: #{tpu_custom_call.1} parent=1 // pred_check
      _
    $region19: #{tpu_custom_call.1} parent=1 // pred_check_branch
      %74 = sbr.rel (0) target = $region21
    $region20: #{tpu_custom_call.1} parent=1 // pred_region
      %s76 = ssub.s32 256, 256
      %77 = vsyncadd [#allocation5], %s76
      %s79 = sshll.u32 [#allocation4], 4
      %s80 = int_to_ptr.vmem [resolvable:$true] %s79
      %82 = dma.vmem_to_hbm [thread:$0]  %s80, 256, %s4, [#allocation5]
    $region21: #{tpu_custom_call.1} parent=1 // pred_fallthru
      _
    // Predicated region
    $region22: #{tpu_custom_call.1} parent=1 // pred_check
      _
    $region23: #{tpu_custom_call.1} parent=1 // pred_check_branch
      %84 = sbr.rel (0) target = $region25
    $region24: #{tpu_custom_call.1} parent=1 // pred_region
      %s86 = ssub.s32 256, 256
      %87 = vsyncadd [#allocation7], %s86
      %s89 = sshll.u32 [#allocation6], 4
      %s90 = int_to_ptr.vmem [resolvable:$true] %s89
      %92 = dma.vmem_to_hbm [thread:$0]  %s90, 256, %s5, [#allocation7]
    $region25: #{tpu_custom_call.1} parent=1 // pred_fallthru
      _
    // Predicated region
    $region26: #{tpu_custom_call.1} parent=1 // pred_check
      _
    $region27: #{tpu_custom_call.1} parent=1 // pred_check_branch
      %94 = sbr.rel (0) target = $region29
    $region28: #{tpu_custom_call.1} parent=1 // pred_region
      %s96 = ssub.s32 256, 256
      %97 = vsyncadd [#allocation7], %s96
      %s99 = sshll.u32 [#allocation8], 4
      %s100 = int_to_ptr.vmem [resolvable:$true] %s99
      %102 = dma.vmem_to_hbm [thread:$0]  %s100, 256, %s6, [#allocation7]
    $region29: #{tpu_custom_call.1} parent=1 // pred_fallthru
      _
    // Predicated region
    $region30: #{tpu_custom_call.1} parent=1 // pred_check
      _
    $region31: #{tpu_custom_call.1} parent=1 // pred_check_branch
      %104 = sbr.rel (0) target = $region33
    $region32: #{tpu_custom_call.1} parent=1 // pred_region
      %105 = dma.done [#allocation5], 256
    $region33: #{tpu_custom_call.1} parent=1 // pred_fallthru
      _
    // Predicated region
    $region34: #{tpu_custom_call.1} parent=1 // pred_check
      _
    $region35: #{tpu_custom_call.1} parent=1 // pred_check_branch
      %107 = sbr.rel (0) target = $region37
    $region36: #{tpu_custom_call.1} parent=1 // pred_region
      %108 = dma.done [#allocation7], 256
    $region37: #{tpu_custom_call.1} parent=1 // pred_fallthru
      _
    // Predicated region
    $region38: #{tpu_custom_call.1} parent=1 // pred_check
      _
    $region39: #{tpu_custom_call.1} parent=1 // pred_check_branch
      %110 = sbr.rel (0) target = $region41
    $region40: #{tpu_custom_call.1} parent=1 // pred_region
      %111 = dma.done [#allocation7], 256
    $region41: #{tpu_custom_call.1} parent=1 // pred_fallthru
      _
    %112 = vsyncpa [#allocation5], 1
    %113 = vsyncpa [#allocation7], 1

</llo_original>
